<compile_context>
chip_gen: v6e
topology: v6e:2x2x1
jax: 0.10.0
libtpu: 0.0.40
codegen_flags: <defaults>
</compile_context>

<pallas_src>
import math

import jax
import jax.numpy as jnp
from jax.experimental import pallas as pl
from jax.experimental.pallas import tpu as pltpu

# ----------------------------------------------------------------------------
# Config mirroring GoalDec.__init__
# ----------------------------------------------------------------------------
STATE_DIMS = {"pos": 2, "vel": 2}

NET_PARAMS = dict(
    goal_inputs=("pos", "vel"),   # -> feature dim F = 4
    obsv_seq_len=8,
    pred_seq_len=12,
    goal_loss="gaussian_nll",
    hidden_dim=32,
)


def loss_func_param(loss_name, d):
    # gaussian NLL over a d-dim goal -> (mean, scale) per dim
    return 2 * d


def _round_up(v, m):
    return ((v + m - 1) // m) * m


def _pick_tile_n(n_pad, max_tile_n):
    """Largest 128-multiple tile that divides n_pad, <= max_tile_n; prefer a
    tile that leaves >= 2 grid steps (v7x megacore) when possible."""
    n_blocks = n_pad // 128
    divisors = [d for d in range(1, n_blocks + 1)
                if n_blocks % d == 0 and d * 128 <= max_tile_n]
    multi = [d for d in divisors if n_blocks // d >= 2]
    d = max(multi) if multi else max(divisors)
    return d * 128


# ----------------------------------------------------------------------------
# Pallas kernel: fused 3-layer MLP (inp -> ReLU -> hidden -> ReLU -> out),
# fully transposed (N on the lane axis).
# ----------------------------------------------------------------------------
def goal_dec_kernel(xT_ref, w1T_ref, whT_ref, woutT_ref, b_ref, oT_ref):
    # xT_ref   : [F+1, tile_n] bf16  -- rows = [x features..., t_pred]
    # w1T_ref  : [H, F+1]   bf16     -- W_in^T
    # whT_ref  : [H, H]     bf16     -- W_h^T
    # woutT_ref: [O_pad, H] bf16     -- W_out^T, rows O..O_pad zero-padded
    # b_ref    : [H, 3]     f32      -- cols = [b_in, b_h, b_out (padded to H)]
    # oT_ref   : [O_pad, tile_n] f32 -- lane-dense output slab
    f32, bf16 = jnp.float32, jnp.bfloat16
    o_pad = oT_ref.shape[0]
    b = b_ref[...]                                       # f32 [H, 3]

    # Layer 1: inp(cat([x, t_pred]))^T = W_in^T @ x_aug^T ; bias/ReLU in f32.
    h = jnp.dot(w1T_ref[...], xT_ref[...], preferred_element_type=f32)
    h = jnp.maximum(h + b[:, 0:1], 0.0)                  # [H, tile_n]

    # Hidden layer + ReLU.
    h = jnp.dot(whT_ref[...], h.astype(bf16), preferred_element_type=f32)
    h = jnp.maximum(h + b[:, 1:2], 0.0)                  # [H, tile_n]

    # Output layer (no activation); direct full-lane store.
    o = jnp.dot(woutT_ref[...], h.astype(bf16), preferred_element_type=f32)
    oT_ref[...] = (o + b[:o_pad, 2:3]).astype(oT_ref.dtype)


# ----------------------------------------------------------------------------
# Parameter packing (transposed, bf16 weights / f32 biases)
# ----------------------------------------------------------------------------
def pack_params(params, out_sublane_pad=8):
    """Pack nn.Linear-style params into the fused transposed-kernel layout."""
    H = params["w_h"].shape[0]
    O = params["w_out"].shape[1]
    assert O <= H
    o_pad = max(_round_up(O, out_sublane_pad), out_sublane_pad)

    w1T = params["w_in"].T.astype(jnp.bfloat16)                        # [H, F+1]
    whT = params["w_h"].T.astype(jnp.bfloat16)                         # [H, H]
    woutT = jnp.pad(params["w_out"].T,
                    ((0, o_pad - O), (0, 0))).astype(jnp.bfloat16)     # [O_pad, H]

    b_out_col = jnp.pad(params["b_out"].T, ((0, H - O), (0, 0)))       # [H, 1]
    b_pack = jnp.concatenate(
        [params["b_in"].T, params["b_h"].T, b_out_col], axis=1)        # [H, 3] f32

    return dict(w1T=w1T, whT=whT, woutT=woutT, b_pack=b_pack,
                out_dim=O, o_pad=o_pad)


# ----------------------------------------------------------------------------
# Wrapper
# ----------------------------------------------------------------------------
def goal_dec_forward(ntx_last, x, packed, obsv_len, max_tile_n=4096):
    """ntx_last: [N] int32 (last timestep index per node), x: [N, F] float.

    Returns [N, O] float32 (PyTorch layout). Downstream code that can consume
    the transposed [O, N] slab should take `oT[:O, :N]` directly to skip the
    final tiny transpose copy.
    """
    N, F = x.shape
    H = packed["whT"].shape[0]
    o_pad = packed["o_pad"]
    O = packed["out_dim"]
    f_dim = F + 1
    bf16 = jnp.bfloat16

    # Glue: t_pred = ntx[-1] - obsv_len; build the transposed bf16 input slab
    # (cast + transpose + concat + pad fuse into one wrapper copy).
    t_row = (ntx_last.astype(jnp.float32)
             - jnp.asarray(obsv_len, jnp.float32)).astype(bf16)[None, :]  # [1, N]
    xT = jnp.concatenate([x.astype(bf16).T, t_row], axis=0)               # [F+1, N]

    n_pad = _round_up(N, 128)
    if n_pad != N:
        xT = jnp.pad(xT, ((0, 0), (0, n_pad - N)))
    tile_n = _pick_tile_n(n_pad, max_tile_n)
    grid = (n_pad // tile_n,)

    oT = pl.pallas_call(
        goal_dec_kernel,
        out_shape=jax.ShapeDtypeStruct((o_pad, n_pad), jnp.float32),
        grid_spec=pltpu.PrefetchScalarGridSpec(
            num_scalar_prefetch=0,
            grid=grid,
            in_specs=[
                pl.BlockSpec((f_dim, tile_n), lambda i: (0, i)),   # x_aug^T tile
                pl.BlockSpec((H, f_dim), lambda i: (0, 0)),        # W_in^T  (resident)
                pl.BlockSpec((H, H), lambda i: (0, 0)),            # W_h^T   (resident)
                pl.BlockSpec((o_pad, H), lambda i: (0, 0)),        # W_out^T (resident)
                pl.BlockSpec((H, 3), lambda i: (0, 0)),            # packed biases
            ],
            out_specs=pl.BlockSpec((o_pad, tile_n), lambda i: (0, i)),
        ),
        compiler_params=pltpu.CompilerParams(
            dimension_semantics=("parallel",)),
    )(xT, packed["w1T"], packed["whT"], packed["woutT"], packed["b_pack"])

    # Back to the PyTorch layout [N, O].
    return oT[:O, :N].T


# ----------------------------------------------------------------------------
# Deterministic parameter init (PyTorch nn.Linear-style uniform +/- 1/sqrt(fan_in))
# ----------------------------------------------------------------------------
def init_params(key, feat_dim, hidden, out_dim):
    def linear(k, fan_in, fan_out):
        kw, kb = jax.random.split(k)
        bound = 1.0 / math.sqrt(fan_in)
        w = jax.random.uniform(kw, (fan_in, fan_out), jnp.float32, -bound, bound)
        b = jax.random.uniform(kb, (1, fan_out), jnp.float32, -bound, bound)
        return w, b

    k1, k2, k3 = jax.random.split(key, 3)
    in_dim = feat_dim + 1                          # +1 for the appended t_pred
    w_in, b_in = linear(k1, in_dim, hidden)        # inp : Linear(F+1, H)
    w_h, b_h = linear(k2, hidden, hidden)          # net : one hidden Linear+ReLU
    w_out, b_out = linear(k3, hidden, out_dim)     # out : Linear(H, O)
    return dict(w_in=w_in, b_in=b_in, w_h=w_h, b_h=b_h, w_out=w_out, b_out=b_out)


# ----------------------------------------------------------------------------
# Plain-JAX reference (original concat form; bf16 MXU operands / f32 bias add
# and accumulation, matching the kernel's arithmetic and PyTorch's structure).
# ----------------------------------------------------------------------------
def reference_forward(ntx_last, x, params, obsv_len):
    f32, bf16 = jnp.float32, jnp.bfloat16
    t_pred = (ntx_last.astype(f32) - obsv_len)[:, None]
    xt = jnp.concatenate([x.astype(f32), t_pred], axis=-1)

    def mm(a, w):
        return jnp.dot(a.astype(bf16), w.astype(bf16), preferred_element_type=f32)

    h = jnp.maximum(mm(xt, params["w_in"]) + params["b_in"], 0.0)
    h = jnp.maximum(mm(h, params["w_h"]) + params["b_h"], 0.0)
    return mm(h, params["w_out"]) + params["b_out"]


# ----------------------------------------------------------------------------
if __name__ == "__main__":
    key = jax.random.PRNGKey(0)
    k_x, k_ntx, k_p = jax.random.split(key, 3)

    F = sum(STATE_DIMS[s] for s in NET_PARAMS["goal_inputs"])    # 4
    hidden = NET_PARAMS["hidden_dim"]                            # 32
    out_dim = loss_func_param(NET_PARAMS["goal_loss"], 2)        # 4
    obsv_len = NET_PARAMS["obsv_seq_len"]
    N = 8  # number of graph nodes (agents)

    x = jax.random.normal(k_x, (N, F), jnp.float32)
    # ntx[-1] per node: last observed/predicted timestep index
    ntx_last = jax.random.randint(k_ntx, (N,), obsv_len,
                                  obsv_len + NET_PARAMS["pred_seq_len"],
                                  jnp.int32)

    params = init_params(k_p, F, hidden, out_dim)
    packed = pack_params(params)

    out = goal_dec_forward(ntx_last, x, packed, obsv_len)
    out = jax.block_until_ready(out)

    ref = reference_forward(ntx_last, x, params, obsv_len)
    assert out.shape == (N, out_dim)
    assert jnp.allclose(out, ref, atol=2e-3, rtol=2e-3), (
        float(jnp.max(jnp.abs(out - ref))))

    print("KERNEL_OK")
</pallas_src>

<mosaic_0001>
module attributes {stable_mosaic.version = 11 : i64} {
  func.func @goal_dec_kernel(%arg0: i32, %arg1: memref<5x128xbf16, #tpu.memory_space<vmem>>, %arg2: memref<32x5xbf16, #tpu.memory_space<vmem>>, %arg3: memref<32x32xbf16, #tpu.memory_space<vmem>>, %arg4: memref<8x32xbf16, #tpu.memory_space<vmem>>, %arg5: memref<32x3xf32, #tpu.memory_space<vmem>>, %arg6: memref<8x128xf32, #tpu.memory_space<vmem>>) attributes {dimension_semantics = [#tpu.dimension_semantics<parallel>], iteration_bounds = array<i64: 1>, scalar_prefetch = 0 : i64, scratch_operands = 0 : i64, tpu.core_type = #tpu.core_type<tc>, window_params = [{transform_indices = @transform_0, window_bounds = array<i64: 5, 128>}, {pipeline_mode = #tpu.pipeline_mode<synchronous>, transform_indices = @transform_1, window_bounds = array<i64: 32, 5>}, {pipeline_mode = #tpu.pipeline_mode<synchronous>, transform_indices = @transform_2, window_bounds = array<i64: 32, 32>}, {pipeline_mode = #tpu.pipeline_mode<synchronous>, transform_indices = @transform_3, window_bounds = array<i64: 8, 32>}, {pipeline_mode = #tpu.pipeline_mode<synchronous>, transform_indices = @transform_4, window_bounds = array<i64: 32, 3>}, {transform_indices = @transform_5, window_bounds = array<i64: 8, 128>}]} {
    %c0 = arith.constant 0 : index
    %c0_0 = arith.constant 0 : index
    %0 = vector.load %arg5[%c0, %c0_0] : memref<32x3xf32, #tpu.memory_space<vmem>>, vector<32x3xf32>
    %c0_1 = arith.constant 0 : index
    %c0_2 = arith.constant 0 : index
    %1 = vector.load %arg2[%c0_1, %c0_2] : memref<32x5xbf16, #tpu.memory_space<vmem>>, vector<32x5xbf16>
    %c0_3 = arith.constant 0 : index
    %c0_4 = arith.constant 0 : index
    %2 = vector.load %arg1[%c0_3, %c0_4] : memref<5x128xbf16, #tpu.memory_space<vmem>>, vector<5x128xbf16>
    %cst = arith.constant dense<0.000000e+00> : vector<32x128xf32>
    %3 = tpu.matmul %1, %2, %cst {dimension_numbers = #tpu.dot_dimension_numbers<[1], [0], [0], [1], [0, 0, 1, 1], [], []>} : vector<32x5xbf16>, vector<5x128xbf16>, vector<32x128xf32> -> vector<32x128xf32>
    %4 = vector.extract_strided_slice %0 {offsets = [0, 0], sizes = [32, 1], strides = [1, 1]} : vector<32x3xf32> to vector<32x1xf32>
    %5 = vector.broadcast %4 : vector<32x1xf32> to vector<32x128xf32>
    %6 = arith.addf %3, %5 : vector<32x128xf32>
    %cst_5 = arith.constant 0.000000e+00 : f32
    %7 = vector.broadcast %cst_5 : f32 to vector<32x128xf32>
    %8 = arith.maximumf %6, %7 : vector<32x128xf32>
    %c0_6 = arith.constant 0 : index
    %c0_7 = arith.constant 0 : index
    %9 = vector.load %arg3[%c0_6, %c0_7] : memref<32x32xbf16, #tpu.memory_space<vmem>>, vector<32x32xbf16>
    %10 = arith.truncf %8 : vector<32x128xf32> to vector<32x128xbf16>
    %cst_8 = arith.constant dense<0.000000e+00> : vector<32x128xf32>
    %11 = tpu.matmul %9, %10, %cst_8 {dimension_numbers = #tpu.dot_dimension_numbers<[1], [0], [0], [1], [0, 0, 1, 1], [], []>} : vector<32x32xbf16>, vector<32x128xbf16>, vector<32x128xf32> -> vector<32x128xf32>
    %12 = vector.extract_strided_slice %0 {offsets = [0, 1], sizes = [32, 1], strides = [1, 1]} : vector<32x3xf32> to vector<32x1xf32>
    %13 = vector.broadcast %12 : vector<32x1xf32> to vector<32x128xf32>
    %14 = arith.addf %11, %13 : vector<32x128xf32>
    %cst_9 = arith.constant 0.000000e+00 : f32
    %15 = vector.broadcast %cst_9 : f32 to vector<32x128xf32>
    %16 = arith.maximumf %14, %15 : vector<32x128xf32>
    %c0_10 = arith.constant 0 : index
    %c0_11 = arith.constant 0 : index
    %17 = vector.load %arg4[%c0_10, %c0_11] : memref<8x32xbf16, #tpu.memory_space<vmem>>, vector<8x32xbf16>
    %18 = arith.truncf %16 : vector<32x128xf32> to vector<32x128xbf16>
    %cst_12 = arith.constant dense<0.000000e+00> : vector<8x128xf32>
    %19 = tpu.matmul %17, %18, %cst_12 {dimension_numbers = #tpu.dot_dimension_numbers<[1], [0], [0], [1], [0, 0, 1, 1], [], []>} : vector<8x32xbf16>, vector<32x128xbf16>, vector<8x128xf32> -> vector<8x128xf32>
    %20 = vector.extract_strided_slice %0 {offsets = [0, 2], sizes = [8, 1], strides = [1, 1]} : vector<32x3xf32> to vector<8x1xf32>
    %21 = vector.broadcast %20 : vector<8x1xf32> to vector<8x128xf32>
    %22 = arith.addf %19, %21 : vector<8x128xf32>
    %c0_13 = arith.constant 0 : index
    %c0_14 = arith.constant 0 : index
    %23 = vector.load %arg6[%c0_13, %c0_14] : memref<8x128xf32, #tpu.memory_space<vmem>>, vector<8x128xf32>
    tpu.vector_store %arg6[%c0_13, %c0_14], %22 {strides = array<i32>} : memref<8x128xf32, #tpu.memory_space<vmem>>, vector<8x128xf32>,
    return
  }
  func.func @transform_0(%arg0: i32) -> (i32, i32) {
    %c0_i32 = arith.constant 0 : i32
    %c0_i32_0 = arith.constant 0 : i32
    return %c0_i32, %arg0 : i32, i32
  }
  func.func @transform_1(%arg0: i32) -> (i32, i32) {
    %c0_i32 = arith.constant 0 : i32
    %c0_i32_0 = arith.constant 0 : i32
    %c0_i32_1 = arith.constant 0 : i32
    return %c0_i32, %c0_i32_0 : i32, i32
  }
  func.func @transform_2(%arg0: i32) -> (i32, i32) {
    %c0_i32 = arith.constant 0 : i32
    %c0_i32_0 = arith.constant 0 : i32
    %c0_i32_1 = arith.constant 0 : i32
    return %c0_i32, %c0_i32_0 : i32, i32
  }
  func.func @transform_3(%arg0: i32) -> (i32, i32) {
    %c0_i32 = arith.constant 0 : i32
    %c0_i32_0 = arith.constant 0 : i32
    %c0_i32_1 = arith.constant 0 : i32
    return %c0_i32, %c0_i32_0 : i32, i32
  }
  func.func @transform_4(%arg0: i32) -> (i32, i32) {
    %c0_i32 = arith.constant 0 : i32
    %c0_i32_0 = arith.constant 0 : i32
    %c0_i32_1 = arith.constant 0 : i32
    return %c0_i32, %c0_i32_0 : i32, i32
  }
  func.func @transform_5(%arg0: i32) -> (i32, i32) {
    %c0_i32 = arith.constant 0 : i32
    %c0_i32_0 = arith.constant 0 : i32
    return %c0_i32, %arg0 : i32, i32
  }
}

</mosaic_0001>

<llo_original>
// kernel: tpu_custom_call.1
$region0: #{tpu_custom_call.1}
  #allocation0 [shape = 'u32[]', space=smem, size = 0x4, offset = 0x4, fixed_abs, tag = 'smem constant byte address 0x4 - core index']
  #allocation1 [shape = 'u32[144,128]{1,0:T(1,128)}', space=vmem, size = 0x12000, scoped, tag = 'internal scratch']
  %s0 = inlined_call_operand.vmem [shape: bf16[5,128], index: 0, kind: input, shape index: {}]
  %s1 = inlined_call_operand.vmem [shape: bf16[32,5], index: 1, kind: input, shape index: {}]
  %s2 = inlined_call_operand.vmem [shape: bf16[32,32], index: 2, kind: input, shape index: {}]
  %s3 = inlined_call_operand.vmem [shape: bf16[8,32], index: 3, kind: input, shape index: {}]
  %s4 = inlined_call_operand.vmem [shape: f32[32,3], index: 4, kind: input, shape index: {}]
  %s5 = inlined_call_operand.hbm [shape: f32[8,128], index: 5, kind: output, shape index: {}]
  %s6 = sld [smem:[#allocation0]]
  $region30: #{tpu_custom_call.1} parent=0
    _
  %s8 = ssub.s32 1, %s6
  %s9 = scalar_select 0, %s8, %s6
  $region1: #{tpu_custom_call.1} parent=0
    #allocation2 [shape = 'u8[4096]{0}', space=vmem, size = 0x1000, scoped, tag = 'output window, operand 0, single buffered']
    #allocation3 [shape = 's32[1]{0}', space=sflag, size = 0x4, scoped, tag = 'scoped memory for tpu_custom_call.1']
    %10 = vsyncpa [#allocation3], 0
    // Predicated region
    $region2: #{tpu_custom_call.1} parent=1 // pred_check
      _
    $region3: #{tpu_custom_call.1} parent=1 // pred_check_branch
      %12 = sbr.rel (0) target = $region5
    $region4: #{tpu_custom_call.1} parent=1 // pred_region
      _
    $region5: #{tpu_custom_call.1} parent=1 // pred_fallthru
      _
    // Predicated region
    $region6: #{tpu_custom_call.1} parent=1 // pred_check
      _
    $region7: #{tpu_custom_call.1} parent=1 // pred_check_branch
      %14 = sbr.rel (0) target = $region9
    $region8: #{tpu_custom_call.1} parent=1 // pred_region
      _
    $region9: #{tpu_custom_call.1} parent=1 // pred_fallthru
      _
    // Predicated region
    $region10: #{tpu_custom_call.1} parent=1 // pred_check
      _
    $region11: #{tpu_custom_call.1} parent=1 // pred_check_branch
      %16 = sbr.rel (0) target = $region13
    $region12: #{tpu_custom_call.1} parent=1 // pred_region
      _
    $region13: #{tpu_custom_call.1} parent=1 // pred_fallthru
      _
    // Predicated region
    $region14: #{tpu_custom_call.1} parent=1 // pred_check
      _
    $region15: #{tpu_custom_call.1} parent=1 // pred_check_branch
      %18 = sbr.rel (0) target = $region17
    $region16: #{tpu_custom_call.1} parent=1 // pred_region
      _
    $region17: #{tpu_custom_call.1} parent=1 // pred_fallthru
      _
    // Predicated region
    $region18: #{tpu_custom_call.1} parent=1 // pred_check
      _
    $region19: #{tpu_custom_call.1} parent=1 // pred_check_branch
      %20 = sbr.rel (0) target = $region21
    $region20: #{tpu_custom_call.1} parent=1 // pred_region
      _
    $region21: #{tpu_custom_call.1} parent=1 // pred_fallthru
      _
    %v22 = vld [vmem:[%s4] sm:$0xff]
    %v23 = vld [vmem:[%s4 + $0x8] sm:$0xff]
    %v24 = vld [vmem:[%s4 + $0x10] sm:$0xff]
    %v25 = vld [vmem:[%s4 + $0x18] sm:$0xff]
    %v26 = vld [vmem:[%s1] sm:$0xf]
    %v27 = vld [vmem:[%s1 + $0x4] sm:$0xf]
    %v28 = vld [vmem:[%s1 + $0x8] sm:$0xf]
    %v29 = vld [vmem:[%s1 + $0xc] sm:$0xf]
    %v30 = vld [vmem:[%s0] sm:$0x7]
    %32 = vset.pattern.permute.xlu0 0
    %33 = vperm.xlu0 %32, %v22
    %v34 = vpop.permute.xlu0 %33
    %37 = vset.pattern.permute.xlu0 0
    %38 = vperm.xlu0 %37, %v23
    %v39 = vpop.permute.xlu0 %38
    %42 = vset.pattern.permute.xlu0 0
    %43 = vperm.xlu0 %42, %v24
    %v44 = vpop.permute.xlu0 %43
    %47 = vset.pattern.permute.xlu0 0
    %48 = vperm.xlu0 %47, %v25
    %v49 = vpop.permute.xlu0 %48
    %v55 = vunpack.c.l.b16 %v26
    %v56 = vunpack.c.l.b16 %v27
    %v57 = vunpack.c.l.b16 %v28
    %v58 = vunpack.c.l.b16 %v29
    %v59 = vpack.c.b16 %v56, %v55
    %v60 = vpack.c.b16 %v58, %v57
    %vm61 = vcmask 39936
    %v63 = vsel %vm61, %v59, 0
    %v66 = vsel %vm61, %v60, 0
    %vm68 = vcmask 1041408
    %vm69 = vcmask 1042432
    %v70 = vsel %vm68, 4294967295, 65535
    %v71 = vsel %vm69, %v70, 0
    %v73 = vand.u32 %v30, %v71
    %75 = vmatprep.subr.bf16.mxu0 0
    %76 = vmatpush1.bf16.msra.mxu0 0
    %77 = vmatprep.subr.bf16.mxu0 0
    %78 = vmatpush1.bf16.msra.mxu0 0
    %79 = vmatprep.subr.bf16.mxu0 0
    %80 = vmatpush1.bf16.msra.mxu0 0
    %81 = vmatprep.subr.bf16.mxu0 0
    %82 = vmatpush1.bf16.msra.mxu0 0
    %83 = vmatprep.subr.bf16.mxu0 0
    %84 = vmatpush1.bf16.msra.mxu0 0
    %85 = vmatprep.subr.bf16.mxu0 0
    %86 = vmatpush1.bf16.msra.mxu0 0
    %87 = vmatprep.subr.bf16.mxu0 0
    %88 = vmatpush1.bf16.msra.mxu0 0
    %89 = vmatprep.subr.bf16.mxu0 0
    %90 = vmatpush1.bf16.msra.mxu0 %v73
    %91 = vmatprep.subr.bf16.mxu0 0
    %92 = vmatpush2.bf16.msra.mxu0 0
    %93 = vmatprep.subr.bf16.mxu0 0
    %94 = vmatpush2.bf16.msra.mxu0 0
    %95 = vmatprep.subr.bf16.mxu0 0
    %96 = vmatpush2.bf16.msra.mxu0 0
    %97 = vmatprep.subr.bf16.mxu0 0
    %98 = vmatpush2.bf16.msra.mxu0 0
    %99 = vmatprep.subr.bf16.mxu0 0
    %100 = vmatpush2.bf16.msra.mxu0 0
    %101 = vmatprep.subr.bf16.mxu0 0
    %102 = vmatpush2.bf16.msra.mxu0 0
    %103 = vmatprep.subr.bf16.mxu0 0
    %104 = vmatpush2.bf16.msra.mxu0 0
    %105 = vmatprep.subr.bf16.mxu0 0
    %106 = vmatpush2.bf16.msra.mxu0 0
    %107 = vmatprep.mubr.bf16.mxu0 0
    %108 = vmatmul.mubr.bf16.gmra.mxu0 %v63
    %v109 = vpop.f32.mrf.mxu0
    %v110 = vadd.f32 %v34, %v109
    %v111 = vpop.f32.mrf.mxu0
    %v112 = vpop.f32.mrf.mxu0
    %v113 = vadd.f32 %v39, %v112
    %v114 = vpop.f32.mrf.mxu0
    %115 = vmatprep.mubr.bf16.mxu0 0
    %116 = vmatmul.mubr.bf16.gmra.mxu0 %v66
    %v117 = vpop.f32.mrf.mxu0
    %v118 = vadd.f32 %v44, %v117
    %v119 = vpop.f32.mrf.mxu0
    %v120 = vpop.f32.mrf.mxu0
    %v121 = vadd.f32 %v49, %v120
    %v122 = vpop.f32.mrf.mxu0
    %123 = vdwg.mxu0
    %v124 = vmax.f32 %v110, 0.0
    %v125 = vmax.f32 %v113, 0.0
    %v126 = vmax.f32 %v118, 0.0
    %v127 = vmax.f32 %v121, 0.0
    %v128 = vld [vmem:[%s2] sm:$0xf]
    %v129 = vld [vmem:[%s2 + $0x4] sm:$0xf]
    %v130 = vld [vmem:[%s2 + $0x8] sm:$0xf]
    %v131 = vld [vmem:[%s2 + $0xc] sm:$0xf]
    %v132 = vpack.c.bf16 %v125, %v124
    %v133 = vpack.c.bf16 %v127, %v126
    %134 = vset.pattern.permute.xlu0 1
    %135 = vperm.xlu0 %134, %v22
    %v136 = vpop.permute.xlu0 %135
    %138 = vset.pattern.permute.xlu0 1
    %139 = vperm.xlu0 %138, %v23
    %v140 = vpop.permute.xlu0 %139
    %142 = vset.pattern.permute.xlu0 1
    %143 = vperm.xlu0 %142, %v24
    %v144 = vpop.permute.xlu0 %143
    %146 = vset.pattern.permute.xlu0 1
    %147 = vperm.xlu0 %146, %v25
    %v148 = vpop.permute.xlu0 %147
    %v154 = vunpack.c.l.b16 %v128
    %v155 = vunpack.c.l.b16 %v129
    %v156 = vunpack.c.l.b16 %v130
    %v157 = vunpack.c.l.b16 %v131
    %v158 = vpack.c.b16 %v155, %v154
    %v159 = vpack.c.b16 %v157, %v156
    %vm160 = vcmask 261120
    %v162 = vsel %vm160, %v158, 0
    %v165 = vsel %vm160, %v159, 0
    %167 = vmatprep.subr.bf16.mxu0 0
    %168 = vmatpush1.bf16.msra.mxu0 0
    %169 = vmatprep.subr.bf16.mxu0 0
    %170 = vmatpush1.bf16.msra.mxu0 0
    %171 = vmatprep.subr.bf16.mxu0 0
    %172 = vmatpush1.bf16.msra.mxu0 0
    %173 = vmatprep.subr.bf16.mxu0 0
    %174 = vmatpush1.bf16.msra.mxu0 0
    %175 = vmatprep.subr.bf16.mxu0 0
    %176 = vmatpush1.bf16.msra.mxu0 0
    %177 = vmatprep.subr.bf16.mxu0 0
    %178 = vmatpush1.bf16.msra.mxu0 0
    %179 = vmatprep.subr.bf16.mxu0 0
    %180 = vmatpush1.bf16.msra.mxu0 %v133
    %181 = vmatprep.subr.bf16.mxu0 0
    %182 = vmatpush1.bf16.msra.mxu0 %v132
    %183 = vmatprep.subr.bf16.mxu0 0
    %184 = vmatpush2.bf16.msra.mxu0 0
    %185 = vmatprep.subr.bf16.mxu0 0
    %186 = vmatpush2.bf16.msra.mxu0 0
    %187 = vmatprep.subr.bf16.mxu0 0
    %188 = vmatpush2.bf16.msra.mxu0 0
    %189 = vmatprep.subr.bf16.mxu0 0
    %190 = vmatpush2.bf16.msra.mxu0 0
    %191 = vmatprep.subr.bf16.mxu0 0
    %192 = vmatpush2.bf16.msra.mxu0 0
    %193 = vmatprep.subr.bf16.mxu0 0
    %194 = vmatpush2.bf16.msra.mxu0 0
    %195 = vmatprep.subr.bf16.mxu0 0
    %196 = vmatpush2.bf16.msra.mxu0 0
    %197 = vmatprep.subr.bf16.mxu0 0
    %198 = vmatpush2.bf16.msra.mxu0 0
    %199 = vmatprep.mubr.bf16.mxu0 0
    %200 = vmatmul.mubr.bf16.gmra.mxu0 %v162
    %v201 = vpop.f32.mrf.mxu0
    %v202 = vadd.f32 %v136, %v201
    %v203 = vpop.f32.mrf.mxu0
    %v204 = vpop.f32.mrf.mxu0
    %v205 = vadd.f32 %v140, %v204
    %v206 = vpop.f32.mrf.mxu0
    %207 = vmatprep.mubr.bf16.mxu0 0
    %208 = vmatmul.mubr.bf16.gmra.mxu0 %v165
    %v209 = vpop.f32.mrf.mxu0
    %v210 = vadd.f32 %v144, %v209
    %v211 = vpop.f32.mrf.mxu0
    %v212 = vpop.f32.mrf.mxu0
    %v213 = vadd.f32 %v148, %v212
    %v214 = vpop.f32.mrf.mxu0
    %215 = vdwg.mxu0
    %v216 = vmax.f32 %v202, 0.0
    %v217 = vmax.f32 %v205, 0.0
    %v218 = vmax.f32 %v210, 0.0
    %v219 = vmax.f32 %v213, 0.0
    %v220 = vld [vmem:[%s3] sm:$0xf]
    %v221 = vpack.c.bf16 %v217, %v216
    %v222 = vpack.c.bf16 %v219, %v218
    %223 = vset.pattern.permute.xlu0 2
    %224 = vperm.xlu0 %223, %v22
    %v225 = vpop.permute.xlu0 %224
    %v228 = vsel %vm160, %v220, 0
    %230 = vmatprep.subr.bf16.mxu0 0
    %231 = vmatpush1.bf16.msra.mxu0 0
    %232 = vmatprep.subr.bf16.mxu0 0
    %233 = vmatpush1.bf16.msra.mxu0 0
    %234 = vmatprep.subr.bf16.mxu0 0
    %235 = vmatpush1.bf16.msra.mxu0 0
    %236 = vmatprep.subr.bf16.mxu0 0
    %237 = vmatpush1.bf16.msra.mxu0 0
    %238 = vmatprep.subr.bf16.mxu0 0
    %239 = vmatpush1.bf16.msra.mxu0 0
    %240 = vmatprep.subr.bf16.mxu0 0
    %241 = vmatpush1.bf16.msra.mxu0 0
    %242 = vmatprep.subr.bf16.mxu0 0
    %243 = vmatpush1.bf16.msra.mxu0 %v222
    %244 = vmatprep.subr.bf16.mxu0 0
    %245 = vmatpush1.bf16.msra.mxu0 %v221
    %246 = vmatprep.subr.bf16.mxu0 0
    %247 = vmatpush2.bf16.msra.mxu0 0
    %248 = vmatprep.subr.bf16.mxu0 0
    %249 = vmatpush2.bf16.msra.mxu0 0
    %250 = vmatprep.subr.bf16.mxu0 0
    %251 = vmatpush2.bf16.msra.mxu0 0
    %252 = vmatprep.subr.bf16.mxu0 0
    %253 = vmatpush2.bf16.msra.mxu0 0
    %254 = vmatprep.subr.bf16.mxu0 0
    %255 = vmatpush2.bf16.msra.mxu0 0
    %256 = vmatprep.subr.bf16.mxu0 0
    %257 = vmatpush2.bf16.msra.mxu0 0
    %258 = vmatprep.subr.bf16.mxu0 0
    %259 = vmatpush2.bf16.msra.mxu0 0
    %260 = vmatprep.subr.bf16.mxu0 0
    %261 = vmatpush2.bf16.msra.mxu0 0
    %262 = vmatprep.mubr.bf16.mxu0 0
    %263 = vmatmul.mubr.bf16.gmra.mxu0 %v228
    %v264 = vpop.f32.mrf.mxu0
    %v265 = vadd.f32 %v225, %v264
    %v266 = vpop.f32.mrf.mxu0
    %v267 = vpop.f32.mrf.mxu0
    %v268 = vpop.f32.mrf.mxu0
    %269 = vdwg.mxu0
    %270 = vst [vmem:[#allocation2] sm:$0xff] %v265
    // Predicated region
    $region22: #{tpu_custom_call.1} parent=1 // pred_check
      _
    $region23: #{tpu_custom_call.1} parent=1 // pred_check_branch
      %272 = sbr.rel (0) target = $region25
    $region24: #{tpu_custom_call.1} parent=1 // pred_region
      %s274 = ssub.s32 128, 128
      %275 = vsyncadd [#allocation3], %s274
      %s277 = sshll.u32 [#allocation2], 4
      %s278 = int_to_ptr.vmem [resolvable:$true] %s277
      %280 = dma.vmem_to_hbm [thread:$0]  %s278, 128, %s5, [#allocation3]
    $region25: #{tpu_custom_call.1} parent=1 // pred_fallthru
      _
    // Predicated region
    $region26: #{tpu_custom_call.1} parent=1 // pred_check
      _
    $region27: #{tpu_custom_call.1} parent=1 // pred_check_branch
      %282 = sbr.rel (0) target = $region29
    $region28: #{tpu_custom_call.1} parent=1 // pred_region
      %283 = dma.done [#allocation3], 128
    $region29: #{tpu_custom_call.1} parent=1 // pred_fallthru
      _
    %284 = vsyncpa [#allocation3], 1

</llo_original>
